<compile_context>
chip_gen: v7x
topology: tpu7x:2x2x1
jax: 0.10.0
libtpu: 0.0.40
codegen_flags: <defaults>
</compile_context>

<pallas_src>
import functools

import jax
import jax.numpy as jnp
from jax.experimental import pallas as pl
from jax.experimental.pallas import tpu as pltpu


# ---------------------------------------------------------------------------
# Kernels
# ---------------------------------------------------------------------------
def _ce_kernel_unweighted(hw, num_tp, needs_mask,
                          logits_ref, tgt_ref, loss_ref, cnt_ref):
    """Unweighted CE lane-partials.  logits (1,C,TH), tgt (1,1,TH) int,
    loss/cnt outputs (1,1,TH) f32 resident across the innermost (t) axis."""
    t_idx = pl.program_id(2)

    @pl.when(t_idx == 0)
    def _():
        loss_ref[...] = jnp.zeros_like(loss_ref)
        cnt_ref[...] = jnp.zeros_like(cnt_ref)

    x_raw = logits_ref[0]                          # (C, TH) native dtype
    x = x_raw.astype(jnp.float32)                  # (C, TH) f32
    tgt = tgt_ref[0].astype(jnp.int32)             # (1, TH)
    c, th = x.shape

    # Numerically-stable log-sum-exp over classes (sublane axis).
    # NOTE: garbage lanes past the real H*W extent (tail / duplicate tiles) may
    # produce inf/NaN here; they are discarded by the jnp.where(valid, ..., 0.0)
    # below (select does not propagate values from the unselected branch).  Do not
    # reorder the mask before the arithmetic.
    m = jnp.max(x, axis=0, keepdims=True)                                  # (1, TH)
    if x_raw.dtype == jnp.bfloat16:
        # bf16 exp on the EUP (v6e/v7x); accumulate the sum in f32.
        e = jnp.exp(x_raw - m.astype(jnp.bfloat16)).astype(jnp.float32)
    else:
        e = jnp.exp(x - m)
    lse = m + jnp.log(jnp.sum(e, axis=0, keepdims=True))                   # (1, TH)

    # Gather logit at the target class via compare + select + sublane reduce
    # (kept off the MXU on purpose — this is elementwise/reduce work).
    cls = jax.lax.broadcasted_iota(jnp.int32, (c, th), 0)                  # (C, TH)
    onehot = cls == tgt
    logit_t = jnp.sum(jnp.where(onehot, x, 0.0), axis=0, keepdims=True)    # (1, TH)
    nll = lse - logit_t                                                    # (1, TH)

    if needs_mask:
        g = pl.program_id(1) * num_tp + t_idx      # global HW-tile index
        lane = jax.lax.broadcasted_iota(jnp.int32, (1, th), 1)
        valid = ((g * th + lane) < hw) & (tgt >= 0)
    else:
        valid = tgt >= 0
    loss_ref[0] += jnp.where(valid, nll, 0.0)
    cnt_ref[0] += jnp.where(valid, 1.0, 0.0)


def _ce_kernel_weighted(hw, num_tp, needs_mask,
                        logits_ref, tgt_ref, wpix_ref, loss_ref, wsum_ref):
    """Class-weighted CE lane-partials.  wpix_ref is the per-pixel weight
    weight[target], gathered in the wrapper as a lane-dense (1,1,TH) f32 block."""
    t_idx = pl.program_id(2)

    @pl.when(t_idx == 0)
    def _():
        loss_ref[...] = jnp.zeros_like(loss_ref)
        wsum_ref[...] = jnp.zeros_like(wsum_ref)

    x_raw = logits_ref[0]                          # (C, TH)
    x = x_raw.astype(jnp.float32)
    tgt = tgt_ref[0].astype(jnp.int32)             # (1, TH)
    w_t = wpix_ref[0]                              # (1, TH) f32
    c, th = x.shape

    m = jnp.max(x, axis=0, keepdims=True)
    if x_raw.dtype == jnp.bfloat16:
        e = jnp.exp(x_raw - m.astype(jnp.bfloat16)).astype(jnp.float32)
    else:
        e = jnp.exp(x - m)
    lse = m + jnp.log(jnp.sum(e, axis=0, keepdims=True))

    cls = jax.lax.broadcasted_iota(jnp.int32, (c, th), 0)
    onehot = cls == tgt
    logit_t = jnp.sum(jnp.where(onehot, x, 0.0), axis=0, keepdims=True)
    nll = (lse - logit_t) * w_t

    if needs_mask:
        g = pl.program_id(1) * num_tp + t_idx
        lane = jax.lax.broadcasted_iota(jnp.int32, (1, th), 1)
        valid = ((g * th + lane) < hw) & (tgt >= 0)
    else:
        valid = tgt >= 0
    loss_ref[0] += jnp.where(valid, nll, 0.0)
    wsum_ref[0] += jnp.where(valid, w_t, 0.0)


# ---------------------------------------------------------------------------
# Wrapper
# ---------------------------------------------------------------------------
def _tpu_vmem_capacity_bytes():
    try:
        return int(pltpu.get_tpu_info().vmem_capacity_bytes)
    except Exception:
        return 64 * 1024 * 1024          # conservative fallback (v7x per-TensorCore)


def cross_entropy_loss_2d(outputs, targets, weight=None, *,
                          max_logits_tile_bytes=8 * 1024 * 1024):
    """outputs: (N, C, H, W) float logits; targets: (N, H, W) int labels.

    Returns the scalar weighted-mean cross-entropy, matching
    torch.nn.CrossEntropyLoss(weight)(outputs, targets) with reduction='mean'.
    If every pixel is ignored (target < 0) the result is NaN (0/0), like PyTorch.
    """
    n, c, h, w_dim = outputs.shape
    hw = h * w_dim

    # Views only — no transpose, no dtype change (bf16 logits / narrow-int targets
    # pass straight through; targets are cast to int32 inside the kernel).
    logits = outputs.reshape(n, c, hw)
    tgt = targets.reshape(n, 1, hw)
    weighted = weight is not None

    # --- generation-aware, sublane-padding-aware tile sizing -----------------
    itemsize = jnp.dtype(outputs.dtype).itemsize
    sub = max(1, 32 // itemsize)                   # sublane packing (f32:8, bf16:16)
    c_pad = ((c + sub - 1) // sub) * sub           # physical sublane-padded class dim
    cap = _tpu_vmem_capacity_bytes()
    budget = int(cap * 0.70)                       # ~45 MiB on v7x, ~90 MiB on v5e/v6e

    per_px_logits = c_pad * itemsize                       # one logits buffer, per lane
    per_px_total = (2 * per_px_logits                      # double-buffered logits
                    + 2 * 8 * 4                            # targets (8-sublane padded)
                    + (2 * 8 * 4 if weighted else 0)       # per-pixel weights
                    + 2 * 2 * 8 * 4)                       # resident loss+norm outputs
    max_hw = max(128, (min(max_logits_tile_bytes // per_px_logits,
                           budget // per_px_total) // 128) * 128)
    hw_pad = pl.cdiv(hw, 128) * 128
    tile_hw = int(min(max_hw, hw_pad))

    num_t = pl.cdiv(hw, tile_hw)
    # Split the pixel axis across both TensorCores (v7x) when the batch axis alone
    # can't keep them busy; duplicate tail tiles are masked out in-kernel.
    p_split = 2 if (n == 1 and num_t >= 2) else 1
    num_tp = pl.cdiv(num_t, p_split)
    grid = (n, p_split, num_tp)
    needs_mask = (hw % tile_hw != 0) or (p_split * num_tp != num_t)

    if p_split == 1:
        hw_block = lambda i, p, t: (i, 0, t)
    else:
        # Clamp the block index for the (masked) duplicate tail tiles.
        hw_block = lambda i, p, t: (i, 0, jnp.minimum(p * num_tp + t, num_t - 1))

    logits_spec = pl.BlockSpec((1, c, tile_hw), hw_block)
    tgt_spec = pl.BlockSpec((1, 1, tile_hw), hw_block)
    out_shape = (jax.ShapeDtypeStruct((n, p_split, tile_hw), jnp.float32),
                 jax.ShapeDtypeStruct((n, p_split, tile_hw), jnp.float32))
    out_specs = (pl.BlockSpec((1, 1, tile_hw), lambda i, p, t: (i, p, 0)),
                 pl.BlockSpec((1, 1, tile_hw), lambda i, p, t: (i, p, 0)))

    est_pipeline_bytes = per_px_total * tile_hw
    vmem_limit = int(min(0.92 * cap,
                         max(32 * 1024 * 1024, est_pipeline_bytes + (4 << 20))))
    compiler_params = pltpu.CompilerParams(
        dimension_semantics=("parallel", "parallel", "arbitrary"),
        vmem_limit_bytes=vmem_limit)

    if not weighted:
        loss_part, norm_part = pl.pallas_call(
            functools.partial(_ce_kernel_unweighted, hw, num_tp, needs_mask),
            out_shape=out_shape,
            grid_spec=pltpu.PrefetchScalarGridSpec(
                num_scalar_prefetch=0, grid=grid,
                in_specs=[logits_spec, tgt_spec],
                out_specs=out_specs),
            compiler_params=compiler_params,
        )(logits, tgt)
    else:
        # Per-pixel weight gather done once in the wrapper (lane-dense f32 input),
        # removing the in-kernel (C,TH) one-hot weight select + sublane reduce.
        w_f32 = weight.astype(jnp.float32)
        tgt_i = tgt.astype(jnp.int32)
        w_pix = jnp.take(w_f32, jnp.clip(tgt_i, 0, c - 1), axis=0)   # (n,1,hw) f32
        loss_part, norm_part = pl.pallas_call(
            functools.partial(_ce_kernel_weighted, hw, num_tp, needs_mask),
            out_shape=out_shape,
            grid_spec=pltpu.PrefetchScalarGridSpec(
                num_scalar_prefetch=0, grid=grid,
                in_specs=[logits_spec, tgt_spec,
                          pl.BlockSpec((1, 1, tile_hw), hw_block)],
                out_specs=out_specs),
            compiler_params=compiler_params,
        )(logits, tgt, w_pix)

    # Tiny final reduction of the lane partials + weighted-mean division in XLA.
    return jnp.sum(loss_part) / jnp.sum(norm_part)


# ---------------------------------------------------------------------------
# Reference + tests
# ---------------------------------------------------------------------------
def _reference_ce(outputs, targets, weight=None):
    n, c, h, w_dim = outputs.shape
    logits = jnp.transpose(outputs, (0, 2, 3, 1)).reshape(-1, c).astype(jnp.float32)
    tgt = targets.reshape(-1).astype(jnp.int32)
    if weight is None:
        weight = jnp.ones((c,), jnp.float32)
    logp = jax.nn.log_softmax(logits, axis=-1)
    nll = -jnp.take_along_axis(logp, tgt[:, None], axis=-1)[:, 0]
    w_t = weight[tgt]
    return jnp.sum(nll * w_t) / jnp.sum(w_t)


if __name__ == "__main__":
    key = jax.random.PRNGKey(0)
    k1, k2, k3, k4, k5, k6, k7 = jax.random.split(key, 7)

    # 1) Module default path: weight=None, NCHW f32 logits + NHW int32 targets.
    N, C, H, W = 2, 4, 16, 16
    outputs = jax.random.normal(k1, (N, C, H, W), dtype=jnp.float32)
    targets = jax.random.randint(k2, (N, H, W), 0, C, dtype=jnp.int32)
    loss = jax.block_until_ready(cross_entropy_loss_2d(outputs, targets, weight=None))
    ref = _reference_ce(outputs, targets, weight=None)
    assert jnp.allclose(loss, ref, rtol=1e-5, atol=1e-5), (loss, ref)

    # 2) Weighted path + non-128-multiple spatial size (exercises tail masking and
    #    the wrapper-side per-pixel weight gather).
    N2, C2, H2, W2 = 2, 5, 15, 15
    outputs2 = jax.random.normal(k3, (N2, C2, H2, W2), dtype=jnp.float32)
    targets2 = jax.random.randint(k4, (N2, H2, W2), 0, C2, dtype=jnp.int32)
    wvec = jax.random.uniform(k5, (C2,), dtype=jnp.float32, minval=0.5, maxval=2.0)
    loss2 = jax.block_until_ready(cross_entropy_loss_2d(outputs2, targets2, weight=wvec))
    ref2 = _reference_ce(outputs2, targets2, weight=wvec)
    assert jnp.allclose(loss2, ref2, rtol=1e-5, atol=1e-5), (loss2, ref2)

    # 3) N=1 + small forced tile: exercises the second parallel (pixel-split) axis,
    #    the clamped index map for the masked duplicate tail tile, and the bf16
    #    exp path (looser tolerance because exp runs in bf16 by design).
    N3, C3, H3, W3 = 1, 4, 24, 24
    outputs3 = jax.random.normal(k6, (N3, C3, H3, W3)).astype(jnp.bfloat16)
    targets3 = jax.random.randint(k7, (N3, H3, W3), 0, C3, dtype=jnp.int32)
    loss3 = jax.block_until_ready(
        cross_entropy_loss_2d(outputs3, targets3, weight=None,
                              max_logits_tile_bytes=4096))
    ref3 = _reference_ce(outputs3, targets3, weight=None)
    assert jnp.allclose(loss3, ref3, rtol=2e-2, atol=2e-2), (loss3, ref3)

    # TODO(synk): exact ignore semantics are "target < 0 is ignored" (PyTorch default
    # ignore_index=-100); in-range ignore labels (e.g. 255 with C <= 255) and
    # out-of-range targets are not special-cased, matching the wrapped module's
    # forward (it never forwards ignore_label to nn.CrossEntropyLoss).
    print("KERNEL_OK")
</pallas_src>

<mosaic_0001>
module attributes {stable_mosaic.version = 11 : i64} {
  func.func @_ce_kernel_unweighted(%arg0: i32, %arg1: i32, %arg2: i32, %arg3: memref<1x4x256xf32, #tpu.memory_space<vmem>>, %arg4: memref<1x1x256xi32, #tpu.memory_space<vmem>>, %arg5: memref<1x1x256xf32, #tpu.memory_space<vmem>>, %arg6: memref<1x1x256xf32, #tpu.memory_space<vmem>>) attributes {dimension_semantics = [#tpu.dimension_semantics<parallel>, #tpu.dimension_semantics<parallel>, #tpu.dimension_semantics<arbitrary>], iteration_bounds = array<i64: 2, 1, 1>, scalar_prefetch = 0 : i64, scratch_operands = 0 : i64, tpu.core_type = #tpu.core_type<tc>, window_params = [{transform_indices = @transform_0, window_bounds = array<i64: 1, 4, 256>}, {transform_indices = @transform_1, window_bounds = array<i64: 1, 1, 256>}, {transform_indices = @transform_2, window_bounds = array<i64: 1, 1, 256>}, {transform_indices = @transform_3, window_bounds = array<i64: 1, 1, 256>}]} {
    %c0_i32 = arith.constant 0 : i32
    %0 = arith.cmpi eq, %arg2, %c0_i32 : i32
    %1 = arith.extui %0 : i1 to i32
    %c0_i32_0 = arith.constant 0 : i32
    %2 = arith.cmpi ne, %1, %c0_i32_0 : i32
    scf.if %2 {
      %cst_25 = arith.constant 0.000000e+00 : f32
      %43 = vector.broadcast %cst_25 : f32 to vector<1x1x256xf32>
      %c0_26 = arith.constant 0 : index
      %c0_27 = arith.constant 0 : index
      %c0_28 = arith.constant 0 : index
      %44 = vector.load %arg5[%c0_26, %c0_27, %c0_28] : memref<1x1x256xf32, #tpu.memory_space<vmem>>, vector<1x1x256xf32>
      tpu.vector_store %arg5[%c0_26, %c0_27, %c0_28], %43 {strides = array<i32>} : memref<1x1x256xf32, #tpu.memory_space<vmem>>, vector<1x1x256xf32>,
      %cst_29 = arith.constant 0.000000e+00 : f32
      %45 = vector.broadcast %cst_29 : f32 to vector<1x1x256xf32>
      %c0_30 = arith.constant 0 : index
      %c0_31 = arith.constant 0 : index
      %c0_32 = arith.constant 0 : index
      %46 = vector.load %arg6[%c0_30, %c0_31, %c0_32] : memref<1x1x256xf32, #tpu.memory_space<vmem>>, vector<1x1x256xf32>
      tpu.vector_store %arg6[%c0_30, %c0_31, %c0_32], %45 {strides = array<i32>} : memref<1x1x256xf32, #tpu.memory_space<vmem>>, vector<1x1x256xf32>,
    } else {
    }
    %c0 = arith.constant 0 : index
    %c0_1 = arith.constant 0 : index
    %c0_2 = arith.constant 0 : index
    %3 = vector.load %arg3[%c0, %c0_1, %c0_2] : memref<1x4x256xf32, #tpu.memory_space<vmem>>, vector<1x4x256xf32>
    %4 = vector.shape_cast %3 : vector<1x4x256xf32> to vector<4x256xf32>
    %c0_3 = arith.constant 0 : index
    %c0_4 = arith.constant 0 : index
    %c0_5 = arith.constant 0 : index
    %5 = vector.load %arg4[%c0_3, %c0_4, %c0_5] : memref<1x1x256xi32, #tpu.memory_space<vmem>>, vector<1x1x256xi32>
    %6 = vector.shape_cast %5 : vector<1x1x256xi32> to vector<1x256xi32>
    %cst = arith.constant dense<0xFF800000> : vector<256xf32>
    %7 = vector.multi_reduction <maximumf>, %4, %cst [0] : vector<4x256xf32> to vector<256xf32>
    %8 = vector.shape_cast %7 : vector<256xf32> to vector<1x256xf32>
    %9 = vector.broadcast %8 : vector<1x256xf32> to vector<4x256xf32>
    %10 = arith.subf %4, %9 : vector<4x256xf32>
    %11 = math.exp %10 : vector<4x256xf32>
    %cst_6 = arith.constant dense<0.000000e+00> : vector<256xf32>
    %12 = vector.multi_reduction <add>, %11, %cst_6 [0] : vector<4x256xf32> to vector<256xf32>
    %13 = vector.shape_cast %12 : vector<256xf32> to vector<1x256xf32>
    %14 = math.log %13 : vector<1x256xf32>
    %15 = arith.addf %8, %14 : vector<1x256xf32>
    %16 = tpu.iota {dimensions = array<i32: 0>} : vector<4x256xi32>
    %17 = vector.broadcast %6 : vector<1x256xi32> to vector<4x256xi32>
    %18 = arith.cmpi eq, %16, %17 : vector<4x256xi32>
    %cst_7 = arith.constant 0.000000e+00 : f32
    %19 = vector.broadcast %cst_7 : f32 to vector<4x256xf32>
    %20 = arith.select %18, %4, %19 : vector<4x256xi1>, vector<4x256xf32>
    %cst_8 = arith.constant dense<0.000000e+00> : vector<256xf32>
    %21 = vector.multi_reduction <add>, %20, %cst_8 [0] : vector<4x256xf32> to vector<256xf32>
    %22 = vector.shape_cast %21 : vector<256xf32> to vector<1x256xf32>
    %23 = arith.subf %15, %22 : vector<1x256xf32>
    %c0_i32_9 = arith.constant 0 : i32
    %24 = vector.broadcast %c0_i32_9 : i32 to vector<1x256xi32>
    %25 = arith.cmpi sge, %6, %24 : vector<1x256xi32>
    %c0_10 = arith.constant 0 : index
    %c0_11 = arith.constant 0 : index
    %c0_12 = arith.constant 0 : index
    %26 = vector.load %arg5[%c0_10, %c0_11, %c0_12] : memref<1x1x256xf32, #tpu.memory_space<vmem>>, vector<1x1x256xf32>
    %27 = vector.shape_cast %26 : vector<1x1x256xf32> to vector<1x256xf32>
    %cst_13 = arith.constant 0.000000e+00 : f32
    %28 = vector.broadcast %cst_13 : f32 to vector<1x256xf32>
    %29 = arith.select %25, %23, %28 : vector<1x256xi1>, vector<1x256xf32>
    %30 = arith.addf %27, %29 : vector<1x256xf32>
    %c0_14 = arith.constant 0 : index
    %c0_15 = arith.constant 0 : index
    %c0_16 = arith.constant 0 : index
    %31 = vector.load %arg5[%c0_14, %c0_15, %c0_16] : memref<1x1x256xf32, #tpu.memory_space<vmem>>, vector<1x1x256xf32>
    %32 = vector.shape_cast %31 : vector<1x1x256xf32> to vector<1x256xf32>
    %33 = vector.shape_cast %30 : vector<1x256xf32> to vector<1x1x256xf32>
    tpu.vector_store %arg5[%c0_14, %c0_15, %c0_16], %33 {strides = array<i32>} : memref<1x1x256xf32, #tpu.memory_space<vmem>>, vector<1x1x256xf32>,
    %c0_17 = arith.constant 0 : index
    %c0_18 = arith.constant 0 : index
    %c0_19 = arith.constant 0 : index
    %34 = vector.load %arg6[%c0_17, %c0_18, %c0_19] : memref<1x1x256xf32, #tpu.memory_space<vmem>>, vector<1x1x256xf32>
    %35 = vector.shape_cast %34 : vector<1x1x256xf32> to vector<1x256xf32>
    %cst_20 = arith.constant 1.000000e+00 : f32
    %cst_21 = arith.constant 0.000000e+00 : f32
    %36 = vector.broadcast %cst_20 : f32 to vector<1x256xf32>
    %37 = vector.broadcast %cst_21 : f32 to vector<1x256xf32>
    %38 = arith.select %25, %36, %37 : vector<1x256xi1>, vector<1x256xf32>
    %39 = arith.addf %35, %38 : vector<1x256xf32>
    %c0_22 = arith.constant 0 : index
    %c0_23 = arith.constant 0 : index
    %c0_24 = arith.constant 0 : index
    %40 = vector.load %arg6[%c0_22, %c0_23, %c0_24] : memref<1x1x256xf32, #tpu.memory_space<vmem>>, vector<1x1x256xf32>
    %41 = vector.shape_cast %40 : vector<1x1x256xf32> to vector<1x256xf32>
    %42 = vector.shape_cast %39 : vector<1x256xf32> to vector<1x1x256xf32>
    tpu.vector_store %arg6[%c0_22, %c0_23, %c0_24], %42 {strides = array<i32>} : memref<1x1x256xf32, #tpu.memory_space<vmem>>, vector<1x1x256xf32>,
    return
  }
  func.func @transform_0(%arg0: i32, %arg1: i32, %arg2: i32) -> (i32, i32, i32) {
    %c0_i32 = arith.constant 0 : i32
    %c0_i32_0 = arith.constant 0 : i32
    return %arg0, %c0_i32, %arg2 : i32, i32, i32
  }
  func.func @transform_1(%arg0: i32, %arg1: i32, %arg2: i32) -> (i32, i32, i32) {
    %c0_i32 = arith.constant 0 : i32
    %c0_i32_0 = arith.constant 0 : i32
    return %arg0, %c0_i32, %arg2 : i32, i32, i32
  }
  func.func @transform_2(%arg0: i32, %arg1: i32, %arg2: i32) -> (i32, i32, i32) {
    %c0_i32 = arith.constant 0 : i32
    %c0_i32_0 = arith.constant 0 : i32
    return %arg0, %arg1, %c0_i32 : i32, i32, i32
  }
  func.func @transform_3(%arg0: i32, %arg1: i32, %arg2: i32) -> (i32, i32, i32) {
    %c0_i32 = arith.constant 0 : i32
    %c0_i32_0 = arith.constant 0 : i32
    return %arg0, %arg1, %c0_i32 : i32, i32, i32
  }
}

</mosaic_0001>

<llo_original>
// kernel: tpu_custom_call.1
$region0: #{tpu_custom_call.1}
  #allocation0 [shape = 'u32[]', space=smem, size = 0x4, offset = 0x4, fixed_abs, tag = 'smem constant byte address 0x4 - core index']
  #allocation1 [shape = 'u32[144,128]{1,0:T(1,128)}', space=vmem, size = 0x12000, scoped, tag = 'internal scratch']
  %s0 = inlined_call_operand.hbm [shape: f32[2,4,256], index: 0, kind: input, shape index: {}]
  %s1 = inlined_call_operand.hbm [shape: s32[2,1,256], index: 1, kind: input, shape index: {}]
  %s2 = inlined_call_operand.hbm [shape: f32[2,1,256], index: 2, kind: output, shape index: {0}]
  %s3 = inlined_call_operand.hbm [shape: f32[2,1,256], index: 3, kind: output, shape index: {1}]
  %4 = xla_tuple %s2, %s3
  %s5 = sld [smem:[#allocation0]]
  $region61: #{tpu_custom_call.1} parent=0
    _
  %s7 = ssub.s32 1, %s5
  %s8 = scalar_select 0, %s7, %s5
  $region1: #{tpu_custom_call.1} parent=0
    #allocation2 [shape = 'u8[8192]{0}', space=vmem, size = 0x2000, scoped, tag = 'input window, operand 0']
    #allocation3 [shape = 's32[2]{0}', space=sflag, size = 0x8, scoped, tag = 'scoped memory for tpu_custom_call.1']
    #allocation4 [shape = 's32[2]{0}', space=sflag, size = 0x8, scoped, tag = 'scoped memory for tpu_custom_call.1']
    #allocation5 [shape = 'u8[2048]{0}', space=vmem, size = 0x800, scoped, tag = 'input window, operand 1']
    #allocation6 [shape = 's32[2]{0}', space=sflag, size = 0x8, scoped, tag = 'scoped memory for tpu_custom_call.1']
    #allocation7 [shape = 'u8[2048]{0}', space=vmem, size = 0x800, scoped, tag = 'output window, operand 0']
    #allocation8 [shape = 'u8[2048]{0}', space=vmem, size = 0x800, scoped, tag = 'output window, operand 1']
    #allocation9 [shape = 's32[2]{0}', space=sflag, size = 0x8, scoped, tag = 'scoped memory for tpu_custom_call.1']
    %9 = vsyncpa [#allocation3], 0
    %s10 = scalar_lea.sflag [#allocation3], 1
    %11 = vsyncpa %s10, 0
    %12 = vsyncpa [#allocation6], 0
    %s13 = scalar_lea.sflag [#allocation6], 1
    %14 = vsyncpa %s13, 0
    %15 = vsyncpa [#allocation4], 0
    %s16 = scalar_lea.sflag [#allocation4], 1
    %17 = vsyncpa %s16, 0
    %18 = vsyncpa [#allocation9], 0
    %s19 = scalar_lea.sflag [#allocation9], 1
    %20 = vsyncpa %s19, 0
    loop: start=0, step=1, limit=4
    $region2: #{tpu_custom_call.1} parent=1 // loop_pre_header
      _
    $region3: #{tpu_custom_call.1} parent=1 // loop_header
      %s22 = sphi 0, %s26
      %p23 = scmp.ge.s32.totalorder %s22, 4
      %s29 = sphi 0, %s48
      %s30 = sphi 0, %s44
      %s31 = sphi 0, %s40
      %s32 = sphi 0, %s29
      %s33 = sphi 0, %s30
      %s34 = sphi 0, %s31
      %s35 = sphi 0, %s32
      %s36 = sphi 0, %s33
      %s37 = sphi 0, %s34
      %s53 = sphi 0, %s55
      %s56 = sphi 0, %s53
      %s57 = sphi 0, %s56
      %s73 = sphi 0, %s57
      %s81 = sphi 0, %s83
      %s84 = sphi 0, %s81
      %s85 = sphi 0, %s84
      %s101 = sphi 0, %s85
      %s109 = sphi 0, %s111
      %s112 = sphi 0, %s109
      %s113 = sphi 0, %s112
      %s129 = sphi 0, %s113
      %s137 = sphi 0, %s139
      %s140 = sphi 0, %s137
      %s141 = sphi 0, %s140
      %s157 = sphi 0, %s141
    $region4: #{tpu_custom_call.1} parent=1 // loop_header_branch
      %25 = sbr.rel (%p23) target = $region8
    $region5: #{tpu_custom_call.1} parent=1 // loop_body
      %s27 = ssub.s32 %s22, 1
      %s28 = ssub.s32 %s22, 2
      %s38 = sadd.s32 1, %s31
      %p39 = scmp.ge.s32.totalorder %s38, 1
      %s40 = scalar_select %p39, 0, %s38
      %s41 = sadd.s32 1, %s30
      %s42 = scalar_select %p39, %s41, %s30
      %p43 = scmp.ge.s32.totalorder %s42, 1
      %s44 = scalar_select %p43, 0, %s42
      %s45 = sadd.s32 1, %s29
      %s46 = scalar_select %p43, %s45, %s29
      %p47 = scmp.ge.s32.totalorder %s46, 2
      %s48 = scalar_select %p47, 0, %s46
      %s49 = ssub.s32 %s29, %s48
      %s50 = ssub.s32 %s31, %s40
      %s51 = sor.u32 %s49, %s50
      %p52 = scmp.eq.s32.totalorder %s51, 0
      %s54 = sadd.s32 %s53, 1
      %s55 = scalar_select %p52, %s53, %s54
      %p58 = pneg %p52
      %p59 = scmp.eq.s32.totalorder %s22, 1
      %p60 = por %p58, %p59
      %p61 = scmp.ne.s32.totalorder %s53, %s56
      %p62 = scmp.eq.s32.totalorder %s22, 0
      %p63 = por %p61, %p62
      %p64 = scmp.ne.s32.totalorder %s53, %s56
      %p65 = scmp.eq.s32.totalorder %s27, 1
      %p66 = por %p64, %p65
      %p67 = scmp.ne.s32.totalorder %s56, %s57
      %p68 = scmp.eq.s32.totalorder %s27, 0
      %p69 = por %p67, %p68
      %p70 = scmp.ne.s32.totalorder %s56, %s57
      %p71 = scmp.eq.s32.totalorder %s28, 1
      %p72 = por %p70, %p71
      %p74 = scmp.ne.s32.totalorder %s57, %s73
      %p75 = scmp.eq.s32.totalorder %s28, 0
      %p76 = por %p74, %p75
      %s77 = ssub.s32 %s29, %s48
      %s78 = ssub.s32 %s31, %s40
      %s79 = sor.u32 %s77, %s78
      %p80 = scmp.eq.s32.totalorder %s79, 0
      %s82 = sadd.s32 %s81, 1
      %s83 = scalar_select %p80, %s81, %s82
      %p86 = pneg %p80
      %p87 = scmp.eq.s32.totalorder %s22, 1
      %p88 = por %p86, %p87
      %p89 = scmp.ne.s32.totalorder %s81, %s84
      %p90 = scmp.eq.s32.totalorder %s22, 0
      %p91 = por %p89, %p90
      %p92 = scmp.ne.s32.totalorder %s81, %s84
      %p93 = scmp.eq.s32.totalorder %s27, 1
      %p94 = por %p92, %p93
      %p95 = scmp.ne.s32.totalorder %s84, %s85
      %p96 = scmp.eq.s32.totalorder %s27, 0
      %p97 = por %p95, %p96
      %p98 = scmp.ne.s32.totalorder %s84, %s85
      %p99 = scmp.eq.s32.totalorder %s28, 1
      %p100 = por %p98, %p99
      %p102 = scmp.ne.s32.totalorder %s85, %s101
      %p103 = scmp.eq.s32.totalorder %s28, 0
      %p104 = por %p102, %p103
      %s105 = ssub.s32 %s29, %s48
      %s106 = ssub.s32 %s30, %s44
      %s107 = sor.u32 %s105, %s106
      %p108 = scmp.eq.s32.totalorder %s107, 0
      %s110 = sadd.s32 %s109, 1
      %s111 = scalar_select %p108, %s109, %s110
      %p114 = pneg %p108
      %p115 = scmp.eq.s32.totalorder %s22, 1
      %p116 = por %p114, %p115
      %p117 = scmp.ne.s32.totalorder %s109, %s112
      %p118 = scmp.eq.s32.totalorder %s22, 0
      %p119 = por %p117, %p118
      %p120 = scmp.ne.s32.totalorder %s109, %s112
      %p121 = scmp.eq.s32.totalorder %s27, 1
      %p122 = por %p120, %p121
      %p123 = scmp.ne.s32.totalorder %s112, %s113
      %p124 = scmp.eq.s32.totalorder %s27, 0
      %p125 = por %p123, %p124
      %p126 = scmp.ne.s32.totalorder %s112, %s113
      %p127 = scmp.eq.s32.totalorder %s28, 1
      %p128 = por %p126, %p127
      %p130 = scmp.ne.s32.totalorder %s113, %s129
      %p131 = scmp.eq.s32.totalorder %s28, 0
      %p132 = por %p130, %p131
      %s133 = ssub.s32 %s29, %s48
      %s134 = ssub.s32 %s30, %s44
      %s135 = sor.u32 %s133, %s134
      %p136 = scmp.eq.s32.totalorder %s135, 0
      %s138 = sadd.s32 %s137, 1
      %s139 = scalar_select %p136, %s137, %s138
      %p142 = pneg %p136
      %p143 = scmp.eq.s32.totalorder %s22, 1
      %p144 = por %p142, %p143
      %p145 = scmp.ne.s32.totalorder %s137, %s140
      %p146 = scmp.eq.s32.totalorder %s22, 0
      %p147 = por %p145, %p146
      %p148 = scmp.ne.s32.totalorder %s137, %s140
      %p149 = scmp.eq.s32.totalorder %s27, 1
      %p150 = por %p148, %p149
      %p151 = scmp.ne.s32.totalorder %s140, %s141
      %p152 = scmp.eq.s32.totalorder %s27, 0
      %p153 = por %p151, %p152
      %p154 = scmp.ne.s32.totalorder %s140, %s141
      %p155 = scmp.eq.s32.totalorder %s28, 1
      %p156 = por %p154, %p155
      %p158 = scmp.ne.s32.totalorder %s141, %s157
      %p159 = scmp.eq.s32.totalorder %s28, 0
      %p160 = por %p158, %p159
      %p161 = scmp.le.s32.totalorder 1, %s22
      %p162 = scmp.lt.s32.totalorder %s22, 3
      %p163 = pnand %p161, %p162
      %p164 = pneg %p163
      // Predicated region
      $region9: #{tpu_custom_call.1} parent=5 // pred_check
        _
      $region10: #{tpu_custom_call.1} parent=5 // pred_check_branch
        %166 = sbr.rel (%p163) target = $region12
      $region11: #{tpu_custom_call.1} parent=5 // pred_region
        %s167 = ssub.s32 %s22, 1
      $region12: #{tpu_custom_call.1} parent=5 // pred_fallthru
        _
      %p168 = scmp.lt.s32.totalorder %s22, 2
      // Predicated region
      $region13: #{tpu_custom_call.1} parent=5 // pred_check
        %p169 = pneg %p168
      $region14: #{tpu_custom_call.1} parent=5 // pred_check_branch
        %171 = sbr.rel (%p169) target = $region16
      $region15: #{tpu_custom_call.1} parent=5 // pred_region
        // Predicated region
        $region17: #{tpu_custom_call.1} parent=15 // pred_check
          %p172 = pneg %p63
        $region18: #{tpu_custom_call.1} parent=15 // pred_check_branch
          %174 = sbr.rel (%p172) target = $region20
        $region19: #{tpu_custom_call.1} parent=15 // pred_region
          %s175 = sand.u32 %s53, 1
          %s176 = scalar_lea.sflag [#allocation3], %s175
          %s177 = sand.u32 %s53, 1
          %s178 = smul.addr %s177, 8
          %s179 = scalar_lea.vmem [#allocation2], %s178
          %s180 = smul.u32 2, %s31
          %s182 = ssub.s32 128, 128
          %183 = vsyncadd %s176, %s182
          %s184 = smul.addr %s29, 2
          %s185 = sadd.s32 %s180, %s184
          %s186 = smul.addr %s185, 64
          %s187 = scalar_lea.hbm %s0, %s186
          %s189 = sshll.u32 %s179, 4
          %s190 = int_to_ptr.vmem [resolvable:$true] %s189
          %192 = dma.hbm_to_vmem [thread:$0]  %s187, 128, %s190, %s176
        $region20: #{tpu_custom_call.1} parent=15 // pred_fallthru
          _
        // Predicated region
        $region21: #{tpu_custom_call.1} parent=15 // pred_check
          %p193 = pneg %p91
        $region22: #{tpu_custom_call.1} parent=15 // pred_check_branch
          %195 = sbr.rel (%p193) target = $region24
        $region23: #{tpu_custom_call.1} parent=15 // pred_region
          %s196 = sand.u32 %s81, 1
          %s197 = scalar_lea.sflag [#allocation6], %s196
          %s198 = sand.u32 %s81, 1
          %s199 = smul.addr %s198, 2
          %s200 = scalar_lea.vmem [#allocation5], %s199
          %s201 = smul.u32 2, %s31
          %s203 = ssub.s32 32, 32
          %204 = vsyncadd %s197, %s203
          %s205 = smul.addr %s29, 2
          %s206 = sadd.s32 %s201, %s205
          %s207 = smul.addr %s206, 16
          %s208 = scalar_lea.hbm %s1, %s207
          %s210 = sshll.u32 %s200, 4
          %s211 = int_to_ptr.vmem [resolvable:$true] %s210
          %213 = dma.hbm_to_vmem [thread:$0]  %s208, 32, %s211, %s197
        $region24: #{tpu_custom_call.1} parent=15 // pred_fallthru
          _
      $region16: #{tpu_custom_call.1} parent=5 // pred_fallthru
        _
      %p214 = scmp.le.s32.totalorder 1, %s22
      %p215 = scmp.lt.s32.totalorder %s22, 3
      %p216 = pnand %p214, %p215
      %p217 = pneg %p216
      // Predicated region
      $region25: #{tpu_custom_call.1} parent=5 // pred_check
        _
      $region26: #{tpu_custom_call.1} parent=5 // pred_check_branch
        %219 = sbr.rel (%p216) target = $region28
      $region27: #{tpu_custom_call.1} parent=5 // pred_region
        %s220 = ssub.s32 %s22, 1
        %s221 = sand.u32 %s56, 1
        %s222 = scalar_lea.sflag [#allocation3], %s221
        %s223 = sand.u32 %s56, 1
        %s224 = smul.addr %s223, 8
        %s225 = scalar_lea.vmem [#allocation2], %s224
        // Predicated region
        $region29: #{tpu_custom_call.1} parent=27 // pred_check
          %p226 = pneg %p69
        $region30: #{tpu_custom_call.1} parent=27 // pred_check_branch
          %228 = sbr.rel (%p226) target = $region32
        $region31: #{tpu_custom_call.1} parent=27 // pred_region
          %229 = dma.done %s222, 128
        $region32: #{tpu_custom_call.1} parent=27 // pred_fallthru
          _
        %s230 = sand.u32 %s84, 1
        %s231 = scalar_lea.sflag [#allocation6], %s230
        %s232 = sand.u32 %s84, 1
        %s233 = smul.addr %s232, 2
        %s234 = scalar_lea.vmem [#allocation5], %s233
        // Predicated region
        $region33: #{tpu_custom_call.1} parent=27 // pred_check
          %p235 = pneg %p97
        $region34: #{tpu_custom_call.1} parent=27 // pred_check_branch
          %237 = sbr.rel (%p235) target = $region36
        $region35: #{tpu_custom_call.1} parent=27 // pred_region
          %238 = dma.done %s231, 32
        $region36: #{tpu_custom_call.1} parent=27 // pred_fallthru
          _
        %s239 = sand.u32 %s56, 1
        %s240 = scalar_lea.sflag [#allocation3], %s239
        %s241 = sand.u32 %s56, 1
        %s242 = smul.addr %s241, 8
        %s243 = scalar_lea.vmem [#allocation2], %s242
        %p244 = pneg %p69
        %p245 = pneg %p66
        %s246 = sand.u32 %s84, 1
        %s247 = scalar_lea.sflag [#allocation6], %s246
        %s248 = sand.u32 %s84, 1
        %s249 = smul.addr %s248, 2
        %s250 = scalar_lea.vmem [#allocation5], %s249
        %p251 = pneg %p97
        %p252 = pneg %p94
        %p253 = pneg %p125
        %p254 = pneg %p122
        %s255 = sand.u32 %s112, 1
        %s256 = scalar_lea.sflag [#allocation4], %s255
        %s257 = sand.u32 %s112, 1
        %s258 = smul.addr %s257, 2
        %s259 = scalar_lea.vmem [#allocation7], %s258
        %p260 = pneg %p153
        %p261 = pneg %p150
        %s262 = sand.u32 %s140, 1
        %s263 = scalar_lea.sflag [#allocation9], %s262
        %s264 = sand.u32 %s140, 1
        %s265 = smul.addr %s264, 2
        %s266 = scalar_lea.vmem [#allocation8], %s265
        %s267 = smul.u32 2, %s34
        %s268 = smul.u32 2, %s34
        %p269 = scmp.eq.s32.totalorder %s34, 0
        // Predicated region
        $region37: #{tpu_custom_call.1} parent=27 // pred_check
          %p270 = pneg %p269
        $region38: #{tpu_custom_call.1} parent=27 // pred_check_branch
          %272 = sbr.rel (%p270) target = $region40
        $region39: #{tpu_custom_call.1} parent=27 // pred_region
          %v273 = vlaneseq
          %vm274 = vcmp.ge.s32.totalorder %v273, 0
          %vm275 = vcmp.lt.s32.totalorder %v273, 256
          %vm276 = vmand %vm274, %vm275
          %277 = vst.msk [vmem:[%s259] sm:$0x3] %vm276, 0.0
          %278 = vst.msk [vmem:[%s266] sm:$0x3] %vm276, 0.0
        $region40: #{tpu_custom_call.1} parent=27 // pred_fallthru
          _
        %v279 = vld [vmem:[%s225] sm:$0xff]
        %v280 = vld [vmem:[%s234] sm:$0x3]
        %v282 = vcombine.high %v279, %v279
        %vm284 = vcmask 1043456
        %v285 = vsel %vm284, %v279, -inf
        %v286 = vrot.slane %v285, 4
        %v287 = vmax.f32 %v285, %v286
        %v288 = vrot.slane %v287, 2
        %v289 = vmax.f32 %v287, %v288
        %v290 = vrot.slane %v289, 1
        %v291 = vmax.f32 %v289, %v290
        %v292 = vsel %vm284, %v282, -inf
        %v293 = vrot.slane %v292, 4
        %v294 = vmax.f32 %v292, %v293
        %v295 = vrot.slane %v294, 2
        %v296 = vmax.f32 %v294, %v295
        %v297 = vrot.slane %v296, 1
        %v298 = vmax.f32 %v296, %v297
        %v301 = vcombine.low %v291, %v298
        %v303 = vsub.f32 %v279, %v301
        %v304 = vmul.f32 %v303, 1.442695
        %v305 = vpow.pop %v304
        %v307 = vcombine.high %v305, %v305
        %v309 = vsel %vm284, %v305, 0.0
        %v310 = vrot.slane %v309, 4
        %v311 = vadd.f32 %v309, %v310
        %v312 = vrot.slane %v311, 2
        %v313 = vadd.f32 %v311, %v312
        %v314 = vrot.slane %v313, 1
        %v315 = vadd.f32 %v313, %v314
        %v316 = vsel %vm284, %v307, 0.0
        %v317 = vrot.slane %v316, 4
        %v318 = vadd.f32 %v316, %v317
        %v319 = vrot.slane %v318, 2
        %v320 = vadd.f32 %v318, %v319
        %v321 = vrot.slane %v320, 1
        %v322 = vadd.f32 %v320, %v321
        %v323 = vlog2.pop %v315
        %v324 = vmul.f32 %v323, 0.6931472
        %v325 = vlog2.pop %v322
        %v326 = vmul.f32 %v325, 0.6931472
        %v327 = vadd.f32 %v291, %v324
        %v328 = vadd.f32 %v298, %v326
        %v329 = vlaneseq
        %v330 = vshrl.u32 %v329, 7
        %v331 = vlaneseq
        %v332 = vshrl.u32 %v331, 7
        %v333 = vsub.s32 0, %v332
        %v334 = vrot.slane %v280, %v333
        %v335 = vlaneseq
        %v336 = vshrl.u32 %v335, 7
        %v337 = vsub.s32 1, %v336
        %v338 = vrot.slane %v280, %v337
        %vm339 = vcmp.eq.s32.totalorder %v330, %v334
        %vm340 = vcmp.eq.s32.totalorder %v330, %v338
        %v341 = vsel %vm339, %v279, 0.0
        %v342 = vsel %vm340, %v282, 0.0
        %v343 = vsel %vm284, %v341, 0.0
        %v344 = vrot.slane %v343, 4
        %v345 = vadd.f32 %v343, %v344
        %v346 = vrot.slane %v345, 2
        %v347 = vadd.f32 %v345, %v346
        %v348 = vrot.slane %v347, 1
        %v349 = vadd.f32 %v347, %v348
        %v350 = vsel %vm284, %v342, 0.0
        %v351 = vrot.slane %v350, 4
        %v352 = vadd.f32 %v350, %v351
        %v353 = vrot.slane %v352, 2
        %v354 = vadd.f32 %v352, %v353
        %v355 = vrot.slane %v354, 1
        %v356 = vadd.f32 %v354, %v355
        %v357 = vsub.f32 %v327, %v349
        %v358 = vsub.f32 %v328, %v356
        %vm359 = vcmp.ge.s32.totalorder %v280, 0
        %v360 = vld [vmem:[%s259] sm:$0x3]
        %v363 = vcombine.low %v357, %v358
        %v365 = vunpack.c.l.s4 1966171168
        %v366 = vunpack.c.0.s8 %v365
        %v367 = vlaneseq
        %v368 = vshrl.u32 %v367, 7
        %v369 = vsub.s32 %v366, %v368
        %v370 = vrot.slane %v363, %v369
        %v372 = vunpack.c.l.s4 1966171168
        %v373 = vunpack.c.0.s8 %v372
        %v374 = vlaneseq
        %v375 = vshrl.u32 %v374, 7
        %v376 = vsub.s32 %v373, %v375
        %v377 = vrot.slane %v370, %v376
        %v379 = vsel %vm359, %v377, 0.0
        %v380 = vadd.f32 %v360, %v379
        %v381 = vlaneseq
        %vm382 = vcmp.ge.s32.totalorder %v381, 0
        %vm383 = vcmp.lt.s32.totalorder %v381, 256
        %vm384 = vmand %vm382, %vm383
        %385 = vst.msk [vmem:[%s259] sm:$0x3] %vm384, %v380
        %v386 = vld [vmem:[%s266] sm:$0x3]
        %v387 = vsel %vm359, 1.0, 0.0
        %v388 = vadd.f32 %v386, %v387
        %389 = vst.msk [vmem:[%s266] sm:$0x3] %vm384, %v388
        %s390 = sand.u32 %s112, 1
        %s391 = scalar_lea.sflag [#allocation4], %s390
        %s392 = sand.u32 %s112, 1
        %s393 = smul.addr %s392, 2
        %s394 = scalar_lea.vmem [#allocation7], %s393
        %s395 = sand.u32 %s140, 1
        %s396 = scalar_lea.sflag [#allocation9], %s395
        %s397 = sand.u32 %s140, 1
        %s398 = smul.addr %s397, 2
        %s399 = scalar_lea.vmem [#allocation8], %s398
        // Predicated region
        $region41: #{tpu_custom_call.1} parent=27 // pred_check
          %p400 = pneg %p122
        $region42: #{tpu_custom_call.1} parent=27 // pred_check_branch
          %402 = sbr.rel (%p400) target = $region44
        $region43: #{tpu_custom_call.1} parent=27 // pred_region
          %s404 = ssub.s32 32, 32
          %405 = vsyncadd %s391, %s404
          %s406 = smul.addr %s33, 2
          %s407 = smul.addr %s32, 2
          %s408 = sadd.s32 %s406, %s407
          %s409 = smul.addr %s408, 16
          %s410 = scalar_lea.hbm %s2, %s409
          %s412 = sshll.u32 %s394, 4
          %s413 = int_to_ptr.vmem [resolvable:$true] %s412
          %415 = dma.vmem_to_hbm [thread:$0]  %s413, 32, %s410, %s391
        $region44: #{tpu_custom_call.1} parent=27 // pred_fallthru
          _
        // Predicated region
        $region45: #{tpu_custom_call.1} parent=27 // pred_check
          %p416 = pneg %p150
        $region46: #{tpu_custom_call.1} parent=27 // pred_check_branch
          %418 = sbr.rel (%p416) target = $region48
        $region47: #{tpu_custom_call.1} parent=27 // pred_region
          %s420 = ssub.s32 32, 32
          %421 = vsyncadd %s396, %s420
          %s422 = smul.addr %s33, 2
          %s423 = smul.addr %s32, 2
          %s424 = sadd.s32 %s422, %s423
          %s425 = smul.addr %s424, 16
          %s426 = scalar_lea.hbm %s3, %s425
          %s428 = sshll.u32 %s399, 4
          %s429 = int_to_ptr.vmem [resolvable:$true] %s428
          %431 = dma.vmem_to_hbm [thread:$0]  %s429, 32, %s426, %s396
        $region48: #{tpu_custom_call.1} parent=27 // pred_fallthru
          _
      $region28: #{tpu_custom_call.1} parent=5 // pred_fallthru
        _
      %p432 = scmp.le.s32.totalorder 2, %s22
      // Predicated region
      $region49: #{tpu_custom_call.1} parent=5 // pred_check
        %p433 = pneg %p432
      $region50: #{tpu_custom_call.1} parent=5 // pred_check_branch
        %435 = sbr.rel (%p433) target = $region52
      $region51: #{tpu_custom_call.1} parent=5 // pred_region
        %s436 = ssub.s32 %s22, 2
        // Predicated region
        $region53: #{tpu_custom_call.1} parent=51 // pred_check
          %p437 = pneg %p128
        $region54: #{tpu_custom_call.1} parent=51 // pred_check_branch
          %439 = sbr.rel (%p437) target = $region56
        $region55: #{tpu_custom_call.1} parent=51 // pred_region
          %s440 = sand.u32 %s113, 1
          %s441 = scalar_lea.sflag [#allocation4], %s440
          %s442 = sand.u32 %s113, 1
          %s443 = smul.addr %s442, 2
          %s444 = scalar_lea.vmem [#allocation7], %s443
          %445 = dma.done %s441, 32
        $region56: #{tpu_custom_call.1} parent=51 // pred_fallthru
          _
        // Predicated region
        $region57: #{tpu_custom_call.1} parent=51 // pred_check
          %p446 = pneg %p156
        $region58: #{tpu_custom_call.1} parent=51 // pred_check_branch
          %448 = sbr.rel (%p446) target = $region60
        $region59: #{tpu_custom_call.1} parent=51 // pred_region
          %s449 = sand.u32 %s141, 1
          %s450 = scalar_lea.sflag [#allocation9], %s449
          %s451 = sand.u32 %s141, 1
          %s452 = smul.addr %s451, 2
          %s453 = scalar_lea.vmem [#allocation8], %s452
          %454 = dma.done %s450, 32
        $region60: #{tpu_custom_call.1} parent=51 // pred_fallthru
          _
      $region52: #{tpu_custom_call.1} parent=5 // pred_fallthru
        _
    $region6: #{tpu_custom_call.1} parent=1 // loop_footer
      %s26 = sadd.s32 1, %s22
    $region7: #{tpu_custom_call.1} parent=1 // loop_footer_branch
      %21 = sbr.rel target = $region3
    $region8: #{tpu_custom_call.1} parent=1 // loop_exit
      _
    %455 = vsyncpa [#allocation3], 1
    %s456 = scalar_lea.sflag [#allocation3], 1
    %457 = vsyncpa %s456, 1
    %458 = vsyncpa [#allocation6], 1
    %s459 = scalar_lea.sflag [#allocation6], 1
    %460 = vsyncpa %s459, 1
    %461 = vsyncpa [#allocation4], 1
    %s462 = scalar_lea.sflag [#allocation4], 1
    %463 = vsyncpa %s462, 1
    %464 = vsyncpa [#allocation9], 1
    %s465 = scalar_lea.sflag [#allocation9], 1
    %466 = vsyncpa %s465, 1

</llo_original>
